<compile_context>
chip_gen: v6e
topology: v6e:2x2x1
jax: 0.10.0
libtpu: 0.0.40
codegen_flags: <defaults>
</compile_context>

<pallas_src>
import jax
import jax.numpy as jnp
from jax.experimental import pallas as pl
from jax.experimental.pallas import tpu as pltpu


def _round_up(x, m):
    return ((x + m - 1) // m) * m


def inverse_dynamics_kernel(
    s_ref, ns_ref,
    w1s_ref, w1n_ref, b1_ref,
    w2_ref, b2_ref,
    w3_ref, b3_ref,
    w4_ref, b4_ref,
    w5_ref, b5_ref,
    out_ref,
):
    bf16 = jnp.bfloat16
    f32 = jnp.float32

    # Layer 1: concat(state, next_state) @ W1  ==  s @ W1[:S] + ns @ W1[S:]
    h = (
        jnp.dot(s_ref[...], w1s_ref[...], preferred_element_type=f32)
        + jnp.dot(ns_ref[...], w1n_ref[...], preferred_element_type=f32)
        + b1_ref[...]
    )
    h = jnp.maximum(h, 0.0)

    h = jnp.dot(h.astype(bf16), w2_ref[...], preferred_element_type=f32) + b2_ref[...]
    h = jnp.maximum(h, 0.0)

    h = jnp.dot(h.astype(bf16), w3_ref[...], preferred_element_type=f32) + b3_ref[...]
    h = jnp.maximum(h, 0.0)

    h = jnp.dot(h.astype(bf16), w4_ref[...], preferred_element_type=f32) + b4_ref[...]
    h = jnp.maximum(h, 0.0)

    out = jnp.dot(h.astype(bf16), w5_ref[...], preferred_element_type=f32) + b5_ref[...]
    out_ref[...] = out.astype(out_ref.dtype)


def inverse_dynamics_forward(state, next_state, params, *, block_b=1024):
    """Embedder (identity) + fused 5-layer MLP as a single Pallas kernel."""
    B, S = state.shape
    (w1, b1), (w2, b2), (w3, b3), (w4, b4), (w5, b5) = params
    H = w1.shape[1]
    A = w5.shape[1]

    # ---- lane-dense padding of the (tiny) hidden-dim weights, once per call.
    # Output dim A stays UNPADDED (last block dim == full array dim is legal).
    HP = _round_up(H, 128)

    def pad2(x, rows, cols):
        return jnp.pad(x, ((0, rows - x.shape[0]), (0, cols - x.shape[1])))

    bf16 = jnp.bfloat16
    # Split W1 so the kernel never needs a concatenated input.
    w1_s = pad2(w1[:S], S, HP).astype(bf16)
    w1_ns = pad2(w1[S:], S, HP).astype(bf16)
    b1p = pad2(b1, 1, HP)                       # biases stay f32
    w2p = pad2(w2, HP, HP).astype(bf16); b2p = pad2(b2, 1, HP)
    w3p = pad2(w3, HP, HP).astype(bf16); b3p = pad2(b3, 1, HP)
    w4p = pad2(w4, HP, HP).astype(bf16); b4p = pad2(b4, 1, HP)
    w5p = pad2(w5, HP, A).astype(bf16);  b5p = b5

    state = state.astype(bf16)
    next_state = next_state.astype(bf16)

    # ---- batch tiling: ragged cdiv grid, no wrapper-side input padding ----
    block_b = int(block_b)
    if B >= 16:
        # Guarantee >= 2 grid steps so ("parallel",) can use both v7x TCs.
        block_b = min(block_b, _round_up(pl.cdiv(B, 2), 8))
    block_b = min(block_b, _round_up(B, 8))
    if block_b >= B:
        block_b = B                          # single full-extent block
    else:
        block_b = max(8, (block_b // 8) * 8)  # ragged tiling needs 8-aligned tiles
    grid = (pl.cdiv(B, block_b),)

    batch_map = lambda i: (i, 0)
    const_map = lambda i: (0, 0)

    weight_args = (w1_s, w1_ns, b1p, w2p, b2p, w3p, b3p, w4p, b4p, w5p, b5p)
    weight_specs = [pl.BlockSpec(w.shape, const_map) for w in weight_args]

    flops = 2 * B * (2 * S * HP + 3 * HP * HP + HP * A)
    bytes_accessed = (
        2 * (2 * B * S)                                            # bf16 inputs
        + sum(int(w.size) * w.dtype.itemsize for w in weight_args)  # weights/biases
        + 4 * B * A                                                # f32 output
    )
    cost = pl.CostEstimate(
        flops=flops, transcendentals=0, bytes_accessed=bytes_accessed
    )

    out = pl.pallas_call(
        inverse_dynamics_kernel,
        out_shape=jax.ShapeDtypeStruct((B, A), jnp.float32),
        grid_spec=pl.GridSpec(
            grid=grid,
            in_specs=[
                pl.BlockSpec((block_b, S), batch_map),
                pl.BlockSpec((block_b, S), batch_map),
            ] + weight_specs,
            out_specs=pl.BlockSpec((block_b, A), batch_map),
        ),
        compiler_params=pltpu.CompilerParams(
            dimension_semantics=("parallel",),   # shards grid steps across TCs
        ),
        cost_estimate=cost,
    )(state, next_state, *weight_args)

    return out


def init_params(key, state_dim, action_dim, hidden_dim):
    """Deterministic init of the 5 Linear layers (weights stored as (in, out))."""
    dims = [
        (2 * state_dim, hidden_dim),
        (hidden_dim, hidden_dim),
        (hidden_dim, hidden_dim),
        (hidden_dim, hidden_dim),
        (hidden_dim, action_dim),
    ]
    params = []
    for i, (fan_in, fan_out) in enumerate(dims):
        kw, kb, key = jax.random.split(jax.random.fold_in(key, i), 3)
        bound = 1.0 / jnp.sqrt(fan_in)
        w = jax.random.uniform(kw, (fan_in, fan_out), jnp.float32, -bound, bound)
        b = jax.random.uniform(kb, (1, fan_out), jnp.float32, -bound, bound)
        params.append((w, b))
    return params


def reference_forward(state, next_state, params):
    x = jnp.concatenate([state, next_state], axis=1)
    h = x
    for i, (w, b) in enumerate(params):
        h = h @ w + b
        if i < len(params) - 1:
            h = jnp.maximum(h, 0.0)
    return h


if __name__ == "__main__":
    state_dim = 16
    action_dim = 8
    hidden_dim = 32

    key = jax.random.PRNGKey(0)
    k_s, k_ns, k_p = jax.random.split(key, 3)
    params = init_params(k_p, state_dim, action_dim, hidden_dim)

    # bf16 matmuls -> loosened tolerances vs. the f32 reference.
    ATOL = 5e-2
    RTOL = 5e-2

    # Case 1: small batch, non-multiple-of-8 -> single full-extent block.
    batch = 10
    state = jax.random.normal(k_s, (batch, state_dim), jnp.float32)
    next_state = jax.random.normal(k_ns, (batch, state_dim), jnp.float32)
    ref = reference_forward(state, next_state, params)

    out = inverse_dynamics_forward(state, next_state, params)
    out = jax.block_until_ready(out)
    assert out.shape == (batch, action_dim)
    assert jnp.allclose(out, ref, atol=ATOL, rtol=RTOL), "mismatch vs reference"

    # Case 2: force a multi-step ragged grid (block_b=8 -> 2 steps, last ragged).
    out2 = inverse_dynamics_forward(state, next_state, params, block_b=8)
    out2 = jax.block_until_ready(out2)
    assert out2.shape == (batch, action_dim)
    assert jnp.allclose(out2, ref, atol=ATOL, rtol=RTOL), "mismatch (ragged grid)"

    # Case 3: batch >= 16 -> auto-split into >= 2 parallel steps (v7x megacore).
    batch3 = 20
    state3 = jax.random.normal(jax.random.fold_in(k_s, 1), (batch3, state_dim), jnp.float32)
    next3 = jax.random.normal(jax.random.fold_in(k_ns, 1), (batch3, state_dim), jnp.float32)
    ref3 = reference_forward(state3, next3, params)
    out3 = inverse_dynamics_forward(state3, next3, params)
    out3 = jax.block_until_ready(out3)
    assert out3.shape == (batch3, action_dim)
    assert jnp.allclose(out3, ref3, atol=ATOL, rtol=RTOL), "mismatch (2-step grid)"

    print("KERNEL_OK")
</pallas_src>

<mosaic_0001>
module attributes {stable_mosaic.version = 11 : i64} {
  func.func @inverse_dynamics_kernel(%arg0: i32, %arg1: memref<10x16xbf16, #tpu.memory_space<vmem>>, %arg2: memref<10x16xbf16, #tpu.memory_space<vmem>>, %arg3: memref<16x128xbf16, #tpu.memory_space<vmem>>, %arg4: memref<16x128xbf16, #tpu.memory_space<vmem>>, %arg5: memref<1x128xf32, #tpu.memory_space<vmem>>, %arg6: memref<128x128xbf16, #tpu.memory_space<vmem>>, %arg7: memref<1x128xf32, #tpu.memory_space<vmem>>, %arg8: memref<128x128xbf16, #tpu.memory_space<vmem>>, %arg9: memref<1x128xf32, #tpu.memory_space<vmem>>, %arg10: memref<128x128xbf16, #tpu.memory_space<vmem>>, %arg11: memref<1x128xf32, #tpu.memory_space<vmem>>, %arg12: memref<128x8xbf16, #tpu.memory_space<vmem>>, %arg13: memref<1x8xf32, #tpu.memory_space<vmem>>, %arg14: memref<10x8xf32, #tpu.memory_space<vmem>>) attributes {dimension_semantics = [#tpu.dimension_semantics<parallel>], iteration_bounds = array<i64: 1>, scalar_prefetch = 0 : i64, scratch_operands = 0 : i64, tpu.core_type = #tpu.core_type<tc>, window_params = [{transform_indices = @transform_0, window_bounds = array<i64: 10, 16>}, {transform_indices = @transform_1, window_bounds = array<i64: 10, 16>}, {pipeline_mode = #tpu.pipeline_mode<synchronous>, transform_indices = @transform_2, window_bounds = array<i64: 16, 128>}, {pipeline_mode = #tpu.pipeline_mode<synchronous>, transform_indices = @transform_3, window_bounds = array<i64: 16, 128>}, {pipeline_mode = #tpu.pipeline_mode<synchronous>, transform_indices = @transform_4, window_bounds = array<i64: 1, 128>}, {pipeline_mode = #tpu.pipeline_mode<synchronous>, transform_indices = @transform_5, window_bounds = array<i64: 128, 128>}, {pipeline_mode = #tpu.pipeline_mode<synchronous>, transform_indices = @transform_6, window_bounds = array<i64: 1, 128>}, {pipeline_mode = #tpu.pipeline_mode<synchronous>, transform_indices = @transform_7, window_bounds = array<i64: 128, 128>}, {pipeline_mode = #tpu.pipeline_mode<synchronous>, transform_indices = @transform_8, window_bounds = array<i64: 1, 128>}, {pipeline_mode = #tpu.pipeline_mode<synchronous>, transform_indices = @transform_9, window_bounds = array<i64: 128, 128>}, {pipeline_mode = #tpu.pipeline_mode<synchronous>, transform_indices = @transform_10, window_bounds = array<i64: 1, 128>}, {pipeline_mode = #tpu.pipeline_mode<synchronous>, transform_indices = @transform_11, window_bounds = array<i64: 128, 8>}, {pipeline_mode = #tpu.pipeline_mode<synchronous>, transform_indices = @transform_12, window_bounds = array<i64: 1, 8>}, {transform_indices = @transform_13, window_bounds = array<i64: 10, 8>}]} {
    %c0 = arith.constant 0 : index
    %c0_0 = arith.constant 0 : index
    %0 = vector.load %arg1[%c0, %c0_0] : memref<10x16xbf16, #tpu.memory_space<vmem>>, vector<10x16xbf16>
    %c0_1 = arith.constant 0 : index
    %c0_2 = arith.constant 0 : index
    %1 = vector.load %arg3[%c0_1, %c0_2] : memref<16x128xbf16, #tpu.memory_space<vmem>>, vector<16x128xbf16>
    %cst = arith.constant dense<0.000000e+00> : vector<10x128xf32>
    %2 = tpu.matmul %0, %1, %cst {dimension_numbers = #tpu.dot_dimension_numbers<[1], [0], [0], [1], [0, 0, 1, 1], [], []>} : vector<10x16xbf16>, vector<16x128xbf16>, vector<10x128xf32> -> vector<10x128xf32>
    %c0_3 = arith.constant 0 : index
    %c0_4 = arith.constant 0 : index
    %3 = vector.load %arg2[%c0_3, %c0_4] : memref<10x16xbf16, #tpu.memory_space<vmem>>, vector<10x16xbf16>
    %c0_5 = arith.constant 0 : index
    %c0_6 = arith.constant 0 : index
    %4 = vector.load %arg4[%c0_5, %c0_6] : memref<16x128xbf16, #tpu.memory_space<vmem>>, vector<16x128xbf16>
    %cst_7 = arith.constant dense<0.000000e+00> : vector<10x128xf32>
    %5 = tpu.matmul %3, %4, %cst_7 {dimension_numbers = #tpu.dot_dimension_numbers<[1], [0], [0], [1], [0, 0, 1, 1], [], []>} : vector<10x16xbf16>, vector<16x128xbf16>, vector<10x128xf32> -> vector<10x128xf32>
    %6 = arith.addf %2, %5 : vector<10x128xf32>
    %c0_8 = arith.constant 0 : index
    %c0_9 = arith.constant 0 : index
    %7 = vector.load %arg5[%c0_8, %c0_9] : memref<1x128xf32, #tpu.memory_space<vmem>>, vector<1x128xf32>
    %8 = vector.broadcast %7 : vector<1x128xf32> to vector<10x128xf32>
    %9 = arith.addf %6, %8 : vector<10x128xf32>
    %cst_10 = arith.constant 0.000000e+00 : f32
    %10 = vector.broadcast %cst_10 : f32 to vector<10x128xf32>
    %11 = arith.maximumf %9, %10 : vector<10x128xf32>
    %12 = arith.truncf %11 : vector<10x128xf32> to vector<10x128xbf16>
    %c0_11 = arith.constant 0 : index
    %c0_12 = arith.constant 0 : index
    %13 = vector.load %arg6[%c0_11, %c0_12] : memref<128x128xbf16, #tpu.memory_space<vmem>>, vector<128x128xbf16>
    %cst_13 = arith.constant dense<0.000000e+00> : vector<10x128xf32>
    %14 = tpu.matmul %12, %13, %cst_13 {dimension_numbers = #tpu.dot_dimension_numbers<[1], [0], [0], [1], [0, 0, 1, 1], [], []>} : vector<10x128xbf16>, vector<128x128xbf16>, vector<10x128xf32> -> vector<10x128xf32>
    %c0_14 = arith.constant 0 : index
    %c0_15 = arith.constant 0 : index
    %15 = vector.load %arg7[%c0_14, %c0_15] : memref<1x128xf32, #tpu.memory_space<vmem>>, vector<1x128xf32>
    %16 = vector.broadcast %15 : vector<1x128xf32> to vector<10x128xf32>
    %17 = arith.addf %14, %16 : vector<10x128xf32>
    %cst_16 = arith.constant 0.000000e+00 : f32
    %18 = vector.broadcast %cst_16 : f32 to vector<10x128xf32>
    %19 = arith.maximumf %17, %18 : vector<10x128xf32>
    %20 = arith.truncf %19 : vector<10x128xf32> to vector<10x128xbf16>
    %c0_17 = arith.constant 0 : index
    %c0_18 = arith.constant 0 : index
    %21 = vector.load %arg8[%c0_17, %c0_18] : memref<128x128xbf16, #tpu.memory_space<vmem>>, vector<128x128xbf16>
    %cst_19 = arith.constant dense<0.000000e+00> : vector<10x128xf32>
    %22 = tpu.matmul %20, %21, %cst_19 {dimension_numbers = #tpu.dot_dimension_numbers<[1], [0], [0], [1], [0, 0, 1, 1], [], []>} : vector<10x128xbf16>, vector<128x128xbf16>, vector<10x128xf32> -> vector<10x128xf32>
    %c0_20 = arith.constant 0 : index
    %c0_21 = arith.constant 0 : index
    %23 = vector.load %arg9[%c0_20, %c0_21] : memref<1x128xf32, #tpu.memory_space<vmem>>, vector<1x128xf32>
    %24 = vector.broadcast %23 : vector<1x128xf32> to vector<10x128xf32>
    %25 = arith.addf %22, %24 : vector<10x128xf32>
    %cst_22 = arith.constant 0.000000e+00 : f32
    %26 = vector.broadcast %cst_22 : f32 to vector<10x128xf32>
    %27 = arith.maximumf %25, %26 : vector<10x128xf32>
    %28 = arith.truncf %27 : vector<10x128xf32> to vector<10x128xbf16>
    %c0_23 = arith.constant 0 : index
    %c0_24 = arith.constant 0 : index
    %29 = vector.load %arg10[%c0_23, %c0_24] : memref<128x128xbf16, #tpu.memory_space<vmem>>, vector<128x128xbf16>
    %cst_25 = arith.constant dense<0.000000e+00> : vector<10x128xf32>
    %30 = tpu.matmul %28, %29, %cst_25 {dimension_numbers = #tpu.dot_dimension_numbers<[1], [0], [0], [1], [0, 0, 1, 1], [], []>} : vector<10x128xbf16>, vector<128x128xbf16>, vector<10x128xf32> -> vector<10x128xf32>
    %c0_26 = arith.constant 0 : index
    %c0_27 = arith.constant 0 : index
    %31 = vector.load %arg11[%c0_26, %c0_27] : memref<1x128xf32, #tpu.memory_space<vmem>>, vector<1x128xf32>
    %32 = vector.broadcast %31 : vector<1x128xf32> to vector<10x128xf32>
    %33 = arith.addf %30, %32 : vector<10x128xf32>
    %cst_28 = arith.constant 0.000000e+00 : f32
    %34 = vector.broadcast %cst_28 : f32 to vector<10x128xf32>
    %35 = arith.maximumf %33, %34 : vector<10x128xf32>
    %36 = arith.truncf %35 : vector<10x128xf32> to vector<10x128xbf16>
    %c0_29 = arith.constant 0 : index
    %c0_30 = arith.constant 0 : index
    %37 = vector.load %arg12[%c0_29, %c0_30] : memref<128x8xbf16, #tpu.memory_space<vmem>>, vector<128x8xbf16>
    %cst_31 = arith.constant dense<0.000000e+00> : vector<10x8xf32>
    %38 = tpu.matmul %36, %37, %cst_31 {dimension_numbers = #tpu.dot_dimension_numbers<[1], [0], [0], [1], [0, 0, 1, 1], [], []>} : vector<10x128xbf16>, vector<128x8xbf16>, vector<10x8xf32> -> vector<10x8xf32>
    %c0_32 = arith.constant 0 : index
    %c0_33 = arith.constant 0 : index
    %39 = vector.load %arg13[%c0_32, %c0_33] : memref<1x8xf32, #tpu.memory_space<vmem>>, vector<1x8xf32>
    %40 = vector.broadcast %39 : vector<1x8xf32> to vector<10x8xf32>
    %41 = arith.addf %38, %40 : vector<10x8xf32>
    %c0_34 = arith.constant 0 : index
    %c0_35 = arith.constant 0 : index
    %42 = vector.load %arg14[%c0_34, %c0_35] : memref<10x8xf32, #tpu.memory_space<vmem>>, vector<10x8xf32>
    tpu.vector_store %arg14[%c0_34, %c0_35], %41 {strides = array<i32>} : memref<10x8xf32, #tpu.memory_space<vmem>>, vector<10x8xf32>,
    return
  }
  func.func @transform_0(%arg0: i32) -> (i32, i32) {
    %c0_i32 = arith.constant 0 : i32
    %c0_i32_0 = arith.constant 0 : i32
    return %arg0, %c0_i32 : i32, i32
  }
  func.func @transform_1(%arg0: i32) -> (i32, i32) {
    %c0_i32 = arith.constant 0 : i32
    %c0_i32_0 = arith.constant 0 : i32
    return %arg0, %c0_i32 : i32, i32
  }
  func.func @transform_2(%arg0: i32) -> (i32, i32) {
    %c0_i32 = arith.constant 0 : i32
    %c0_i32_0 = arith.constant 0 : i32
    %c0_i32_1 = arith.constant 0 : i32
    return %c0_i32, %c0_i32_0 : i32, i32
  }
  func.func @transform_3(%arg0: i32) -> (i32, i32) {
    %c0_i32 = arith.constant 0 : i32
    %c0_i32_0 = arith.constant 0 : i32
    %c0_i32_1 = arith.constant 0 : i32
    return %c0_i32, %c0_i32_0 : i32, i32
  }
  func.func @transform_4(%arg0: i32) -> (i32, i32) {
    %c0_i32 = arith.constant 0 : i32
    %c0_i32_0 = arith.constant 0 : i32
    %c0_i32_1 = arith.constant 0 : i32
    return %c0_i32, %c0_i32_0 : i32, i32
  }
  func.func @transform_5(%arg0: i32) -> (i32, i32) {
    %c0_i32 = arith.constant 0 : i32
    %c0_i32_0 = arith.constant 0 : i32
    %c0_i32_1 = arith.constant 0 : i32
    return %c0_i32, %c0_i32_0 : i32, i32
  }
  func.func @transform_6(%arg0: i32) -> (i32, i32) {
    %c0_i32 = arith.constant 0 : i32
    %c0_i32_0 = arith.constant 0 : i32
    %c0_i32_1 = arith.constant 0 : i32
    return %c0_i32, %c0_i32_0 : i32, i32
  }
  func.func @transform_7(%arg0: i32) -> (i32, i32) {
    %c0_i32 = arith.constant 0 : i32
    %c0_i32_0 = arith.constant 0 : i32
    %c0_i32_1 = arith.constant 0 : i32
    return %c0_i32, %c0_i32_0 : i32, i32
  }
  func.func @transform_8(%arg0: i32) -> (i32, i32) {
    %c0_i32 = arith.constant 0 : i32
    %c0_i32_0 = arith.constant 0 : i32
    %c0_i32_1 = arith.constant 0 : i32
    return %c0_i32, %c0_i32_0 : i32, i32
  }
  func.func @transform_9(%arg0: i32) -> (i32, i32) {
    %c0_i32 = arith.constant 0 : i32
    %c0_i32_0 = arith.constant 0 : i32
    %c0_i32_1 = arith.constant 0 : i32
    return %c0_i32, %c0_i32_0 : i32, i32
  }
  func.func @transform_10(%arg0: i32) -> (i32, i32) {
    %c0_i32 = arith.constant 0 : i32
    %c0_i32_0 = arith.constant 0 : i32
    %c0_i32_1 = arith.constant 0 : i32
    return %c0_i32, %c0_i32_0 : i32, i32
  }
  func.func @transform_11(%arg0: i32) -> (i32, i32) {
    %c0_i32 = arith.constant 0 : i32
    %c0_i32_0 = arith.constant 0 : i32
    %c0_i32_1 = arith.constant 0 : i32
    return %c0_i32, %c0_i32_0 : i32, i32
  }
  func.func @transform_12(%arg0: i32) -> (i32, i32) {
    %c0_i32 = arith.constant 0 : i32
    %c0_i32_0 = arith.constant 0 : i32
    %c0_i32_1 = arith.constant 0 : i32
    return %c0_i32, %c0_i32_0 : i32, i32
  }
  func.func @transform_13(%arg0: i32) -> (i32, i32) {
    %c0_i32 = arith.constant 0 : i32
    %c0_i32_0 = arith.constant 0 : i32
    return %arg0, %c0_i32 : i32, i32
  }
}

</mosaic_0001>

<llo_original>
// kernel: tpu_custom_call.1
$region0: #{tpu_custom_call.1}
  #allocation0 [shape = 'u32[]', space=smem, size = 0x4, offset = 0x4, fixed_abs, tag = 'smem constant byte address 0x4 - core index']
  #allocation1 [shape = 'u32[144,128]{1,0:T(1,128)}', space=vmem, size = 0x12000, scoped, tag = 'internal scratch']
  %s0 = inlined_call_operand.vmem [shape: bf16[10,16], index: 0, kind: input, shape index: {}]
  %s1 = inlined_call_operand.hbm [shape: bf16[10,16], index: 1, kind: input, shape index: {}]
  %s2 = inlined_call_operand.hbm [shape: bf16[16,128], index: 2, kind: input, shape index: {}]
  %s3 = inlined_call_operand.hbm [shape: bf16[16,128], index: 3, kind: input, shape index: {}]
  %s4 = inlined_call_operand.vmem [shape: f32[1,128], index: 4, kind: input, shape index: {}]
  %s5 = inlined_call_operand.vmem [shape: bf16[128,128], index: 5, kind: input, shape index: {}]
  %s6 = inlined_call_operand.vmem [shape: f32[1,128], index: 6, kind: input, shape index: {}]
  %s7 = inlined_call_operand.hbm [shape: bf16[128,128], index: 7, kind: input, shape index: {}]
  %s8 = inlined_call_operand.vmem [shape: f32[1,128], index: 8, kind: input, shape index: {}]
  %s9 = inlined_call_operand.hbm [shape: bf16[128,128], index: 9, kind: input, shape index: {}]
  %s10 = inlined_call_operand.vmem [shape: f32[1,128], index: 10, kind: input, shape index: {}]
  %s11 = inlined_call_operand.vmem [shape: bf16[128,8], index: 11, kind: input, shape index: {}]
  %s12 = inlined_call_operand.vmem [shape: f32[1,8], index: 12, kind: input, shape index: {}]
  %s13 = inlined_call_operand.vmem [shape: f32[10,8], index: 13, kind: output, shape index: {}]
  %s14 = sld [smem:[#allocation0]]
  $region82: #{tpu_custom_call.1} parent=0
    _
  %s16 = ssub.s32 1, %s14
  %s17 = scalar_select 0, %s16, %s14
  $region1: #{tpu_custom_call.1} parent=0
    #allocation2 [shape = 'u8[4096]{0}', space=vmem, size = 0x1000, scoped, tag = 'input window, operand 1, single buffered']
    #allocation3 [shape = 's32[1]{0}', space=sflag, size = 0x4, scoped, tag = 'scoped memory for tpu_custom_call.1']
    #allocation4 [shape = 'u8[4096]{0}', space=vmem, size = 0x1000, scoped, tag = 'input window, operand 2, single buffered']
    #allocation5 [shape = 's32[1]{0}', space=sflag, size = 0x4, scoped, tag = 'scoped memory for tpu_custom_call.1']
    #allocation6 [shape = 'u8[4096]{0}', space=vmem, size = 0x1000, scoped, tag = 'input window, operand 3, single buffered']
    #allocation7 [shape = 'u8[32768]{0}', space=vmem, size = 0x8000, scoped, tag = 'input window, operand 7, single buffered']
    #allocation8 [shape = 's32[1]{0}', space=sflag, size = 0x4, scoped, tag = 'scoped memory for tpu_custom_call.1']
    #allocation9 [shape = 'u8[32768]{0}', space=vmem, size = 0x8000, scoped, tag = 'input window, operand 9, single buffered']
    %18 = vsyncpa [#allocation3], 0
    %19 = vsyncpa [#allocation5], 0
    %20 = vsyncpa [#allocation8], 0
    // Predicated region
    $region2: #{tpu_custom_call.1} parent=1 // pred_check
      _
    $region3: #{tpu_custom_call.1} parent=1 // pred_check_branch
      %22 = sbr.rel (0) target = $region5
    $region4: #{tpu_custom_call.1} parent=1 // pred_region
      _
    $region5: #{tpu_custom_call.1} parent=1 // pred_fallthru
      _
    // Predicated region
    $region6: #{tpu_custom_call.1} parent=1 // pred_check
      _
    $region7: #{tpu_custom_call.1} parent=1 // pred_check_branch
      %24 = sbr.rel (0) target = $region9
    $region8: #{tpu_custom_call.1} parent=1 // pred_region
      %s26 = ssub.s32 128, 128
      %27 = vsyncadd [#allocation3], %s26
      %s28 = sshll.u32 [#allocation2], 4
      %s29 = int_to_ptr.vmem [resolvable:$true] %s28
      %34 = dma.hbm_to_vmem [thread:$0]  %s1, 128, %s29, [#allocation3], 64, 64, 4
    $region9: #{tpu_custom_call.1} parent=1 // pred_fallthru
      _
    // Predicated region
    $region10: #{tpu_custom_call.1} parent=1 // pred_check
      _
    $region11: #{tpu_custom_call.1} parent=1 // pred_check_branch
      %36 = sbr.rel (0) target = $region13
    $region12: #{tpu_custom_call.1} parent=1 // pred_region
      %s38 = ssub.s32 128, 128
      %39 = vsyncadd [#allocation5], %s38
      %s40 = sshll.u32 [#allocation4], 4
      %s41 = int_to_ptr.vmem [resolvable:$true] %s40
      %46 = dma.hbm_to_vmem [thread:$0]  %s2, 128, %s41, [#allocation5], 64, 64, 4
    $region13: #{tpu_custom_call.1} parent=1 // pred_fallthru
      _
    // Predicated region
    $region14: #{tpu_custom_call.1} parent=1 // pred_check
      _
    $region15: #{tpu_custom_call.1} parent=1 // pred_check_branch
      %48 = sbr.rel (0) target = $region17
    $region16: #{tpu_custom_call.1} parent=1 // pred_region
      %s50 = ssub.s32 128, 128
      %51 = vsyncadd [#allocation5], %s50
      %s52 = sshll.u32 [#allocation6], 4
      %s53 = int_to_ptr.vmem [resolvable:$true] %s52
      %58 = dma.hbm_to_vmem [thread:$0]  %s3, 128, %s53, [#allocation5], 64, 64, 4
    $region17: #{tpu_custom_call.1} parent=1 // pred_fallthru
      _
    // Predicated region
    $region18: #{tpu_custom_call.1} parent=1 // pred_check
      _
    $region19: #{tpu_custom_call.1} parent=1 // pred_check_branch
      %60 = sbr.rel (0) target = $region21
    $region20: #{tpu_custom_call.1} parent=1 // pred_region
      _
    $region21: #{tpu_custom_call.1} parent=1 // pred_fallthru
      _
    // Predicated region
    $region22: #{tpu_custom_call.1} parent=1 // pred_check
      _
    $region23: #{tpu_custom_call.1} parent=1 // pred_check_branch
      %62 = sbr.rel (0) target = $region25
    $region24: #{tpu_custom_call.1} parent=1 // pred_region
      _
    $region25: #{tpu_custom_call.1} parent=1 // pred_fallthru
      _
    // Predicated region
    $region26: #{tpu_custom_call.1} parent=1 // pred_check
      _
    $region27: #{tpu_custom_call.1} parent=1 // pred_check_branch
      %64 = sbr.rel (0) target = $region29
    $region28: #{tpu_custom_call.1} parent=1 // pred_region
      _
    $region29: #{tpu_custom_call.1} parent=1 // pred_fallthru
      _
    // Predicated region
    $region30: #{tpu_custom_call.1} parent=1 // pred_check
      _
    $region31: #{tpu_custom_call.1} parent=1 // pred_check_branch
      %66 = sbr.rel (0) target = $region33
    $region32: #{tpu_custom_call.1} parent=1 // pred_region
      %s68 = ssub.s32 1024, 1024
      %69 = vsyncadd [#allocation8], %s68
      %s70 = sshll.u32 [#allocation7], 4
      %s71 = int_to_ptr.vmem [resolvable:$true] %s70
      %76 = dma.hbm_to_vmem [thread:$0]  %s7, 1024, %s71, [#allocation8], 64, 64, 4
    $region33: #{tpu_custom_call.1} parent=1 // pred_fallthru
      _
    // Predicated region
    $region34: #{tpu_custom_call.1} parent=1 // pred_check
      _
    $region35: #{tpu_custom_call.1} parent=1 // pred_check_branch
      %78 = sbr.rel (0) target = $region37
    $region36: #{tpu_custom_call.1} parent=1 // pred_region
      _
    $region37: #{tpu_custom_call.1} parent=1 // pred_fallthru
      _
    // Predicated region
    $region38: #{tpu_custom_call.1} parent=1 // pred_check
      _
    $region39: #{tpu_custom_call.1} parent=1 // pred_check_branch
      %80 = sbr.rel (0) target = $region41
    $region40: #{tpu_custom_call.1} parent=1 // pred_region
      %s82 = ssub.s32 1024, 1024
      %83 = vsyncadd [#allocation8], %s82
      %s84 = sshll.u32 [#allocation9], 4
      %s85 = int_to_ptr.vmem [resolvable:$true] %s84
      %90 = dma.hbm_to_vmem [thread:$0]  %s9, 1024, %s85, [#allocation8], 64, 64, 4
    $region41: #{tpu_custom_call.1} parent=1 // pred_fallthru
      _
    // Predicated region
    $region42: #{tpu_custom_call.1} parent=1 // pred_check
      _
    $region43: #{tpu_custom_call.1} parent=1 // pred_check_branch
      %92 = sbr.rel (0) target = $region45
    $region44: #{tpu_custom_call.1} parent=1 // pred_region
      _
    $region45: #{tpu_custom_call.1} parent=1 // pred_fallthru
      _
    // Predicated region
    $region46: #{tpu_custom_call.1} parent=1 // pred_check
      _
    $region47: #{tpu_custom_call.1} parent=1 // pred_check_branch
      %94 = sbr.rel (0) target = $region49
    $region48: #{tpu_custom_call.1} parent=1 // pred_region
      _
    $region49: #{tpu_custom_call.1} parent=1 // pred_fallthru
      _
    // Predicated region
    $region50: #{tpu_custom_call.1} parent=1 // pred_check
      _
    $region51: #{tpu_custom_call.1} parent=1 // pred_check_branch
      %96 = sbr.rel (0) target = $region53
    $region52: #{tpu_custom_call.1} parent=1 // pred_region
      _
    $region53: #{tpu_custom_call.1} parent=1 // pred_fallthru
      _
    // Predicated region
    $region54: #{tpu_custom_call.1} parent=1 // pred_check
      _
    $region55: #{tpu_custom_call.1} parent=1 // pred_check_branch
      %98 = sbr.rel (0) target = $region57
    $region56: #{tpu_custom_call.1} parent=1 // pred_region
      %99 = dma.done [#allocation3], 128
    $region57: #{tpu_custom_call.1} parent=1 // pred_fallthru
      _
    // Predicated region
    $region58: #{tpu_custom_call.1} parent=1 // pred_check
      _
    $region59: #{tpu_custom_call.1} parent=1 // pred_check_branch
      %101 = sbr.rel (0) target = $region61
    $region60: #{tpu_custom_call.1} parent=1 // pred_region
      %102 = dma.done [#allocation5], 128
    $region61: #{tpu_custom_call.1} parent=1 // pred_fallthru
      _
    // Predicated region
    $region62: #{tpu_custom_call.1} parent=1 // pred_check
      _
    $region63: #{tpu_custom_call.1} parent=1 // pred_check_branch
      %104 = sbr.rel (0) target = $region65
    $region64: #{tpu_custom_call.1} parent=1 // pred_region
      %105 = dma.done [#allocation5], 128
    $region65: #{tpu_custom_call.1} parent=1 // pred_fallthru
      _
    // Predicated region
    $region66: #{tpu_custom_call.1} parent=1 // pred_check
      _
    $region67: #{tpu_custom_call.1} parent=1 // pred_check_branch
      %107 = sbr.rel (0) target = $region69
    $region68: #{tpu_custom_call.1} parent=1 // pred_region
      %108 = dma.done [#allocation8], 1024
    $region69: #{tpu_custom_call.1} parent=1 // pred_fallthru
      _
    // Predicated region
    $region70: #{tpu_custom_call.1} parent=1 // pred_check
      _
    $region71: #{tpu_custom_call.1} parent=1 // pred_check_branch
      %110 = sbr.rel (0) target = $region73
    $region72: #{tpu_custom_call.1} parent=1 // pred_region
      %111 = dma.done [#allocation8], 1024
    $region73: #{tpu_custom_call.1} parent=1 // pred_fallthru
      _
    %v113 = vld [vmem:[%s0] sm:$0xf]
    %v114 = vld [vmem:[%s0 + $0x4] sm:$0x1]
    %v115 = vld [vmem:[#allocation4] sm:$0xf]
    %v116 = vld [vmem:[#allocation4 + $0x4] sm:$0xf]
    %v117 = vld [vmem:[#allocation2] sm:$0xf]
    %v118 = vld [vmem:[#allocation2 + $0x4] sm:$0x1]
    %v119 = vld [vmem:[#allocation6] sm:$0xf]
    %v120 = vld [vmem:[#allocation6 + $0x4] sm:$0xf]
    %v123 = vunpack.c.l.b16 %v117
    %v124 = vunpack.c.l.b16 %v118
    %v125 = vpack.c.b16 %v124, %v123
    %v128 = vunpack.c.l.b16 %v119
    %v129 = vunpack.c.l.b16 %v120
    %v130 = vpack.c.b16 %v129, %v128
    %vm132 = vcmask 130048
    %v134 = vsel %vm132, %v125, 0
    %136 = vmatprep.subr.bf16.mxu0 0
    %137 = vmatpush1.bf16.msra.mxu0 0
    %138 = vmatprep.subr.bf16.mxu0 0
    %139 = vmatpush1.bf16.msra.mxu0 0
    %140 = vmatprep.subr.bf16.mxu0 0
    %141 = vmatpush1.bf16.msra.mxu0 0
    %142 = vmatprep.subr.bf16.mxu0 0
    %143 = vmatpush1.bf16.msra.mxu0 0
    %144 = vmatprep.subr.bf16.mxu0 0
    %145 = vmatpush1.bf16.msra.mxu0 0
    %146 = vmatprep.subr.bf16.mxu0 0
    %147 = vmatpush1.bf16.msra.mxu0 0
    %148 = vmatprep.subr.bf16.mxu0 0
    %149 = vmatpush1.bf16.msra.mxu0 0
    %150 = vmatprep.subr.bf16.mxu0 0
    %151 = vmatpush1.bf16.msra.mxu0 %v130
    %152 = vmatprep.subr.bf16.mxu0 0
    %153 = vmatpush2.bf16.msra.mxu0 0
    %154 = vmatprep.subr.bf16.mxu0 0
    %155 = vmatpush2.bf16.msra.mxu0 0
    %156 = vmatprep.subr.bf16.mxu0 0
    %157 = vmatpush2.bf16.msra.mxu0 0
    %158 = vmatprep.subr.bf16.mxu0 0
    %159 = vmatpush2.bf16.msra.mxu0 0
    %160 = vmatprep.subr.bf16.mxu0 0
    %161 = vmatpush2.bf16.msra.mxu0 0
    %162 = vmatprep.subr.bf16.mxu0 0
    %163 = vmatpush2.bf16.msra.mxu0 0
    %164 = vmatprep.subr.bf16.mxu0 0
    %165 = vmatpush2.bf16.msra.mxu0 0
    %166 = vmatprep.subr.bf16.mxu0 0
    %167 = vmatpush2.bf16.msra.mxu0 0
    %168 = vmatprep.mubr.bf16.mxu0 0
    %169 = vmatmul.mubr.bf16.gmra.mxu0 %v134
    %v170 = vpop.f32.mrf.mxu0
    %v171 = vadd.f32 0.0, %v170
    %v172 = vpop.f32.mrf.mxu0
    %v173 = vpop.f32.mrf.mxu0
    %v174 = vadd.f32 0.0, %v173
    %v175 = vpop.f32.mrf.mxu0
    %176 = vdwg.mxu0
    %v179 = vunpack.c.l.b16 %v113
    %v180 = vunpack.c.l.b16 %v114
    %v181 = vpack.c.b16 %v180, %v179
    %v184 = vunpack.c.l.b16 %v115
    %v185 = vunpack.c.l.b16 %v116
    %v186 = vpack.c.b16 %v185, %v184
    %v189 = vsel %vm132, %v181, 0
    %191 = vmatprep.subr.bf16.mxu0 0
    %192 = vmatpush1.bf16.msra.mxu0 0
    %193 = vmatprep.subr.bf16.mxu0 0
    %194 = vmatpush1.bf16.msra.mxu0 0
    %195 = vmatprep.subr.bf16.mxu0 0
    %196 = vmatpush1.bf16.msra.mxu0 0
    %197 = vmatprep.subr.bf16.mxu0 0
    %198 = vmatpush1.bf16.msra.mxu0 0
    %199 = vmatprep.subr.bf16.mxu0 0
    %200 = vmatpush1.bf16.msra.mxu0 0
    %201 = vmatprep.subr.bf16.mxu0 0
    %202 = vmatpush1.bf16.msra.mxu0 0
    %203 = vmatprep.subr.bf16.mxu0 0
    %204 = vmatpush1.bf16.msra.mxu0 0
    %205 = vmatprep.subr.bf16.mxu0 0
    %206 = vmatpush1.bf16.msra.mxu0 %v186
    %207 = vmatprep.subr.bf16.mxu0 0
    %208 = vmatpush2.bf16.msra.mxu0 0
    %209 = vmatprep.subr.bf16.mxu0 0
    %210 = vmatpush2.bf16.msra.mxu0 0
    %211 = vmatprep.subr.bf16.mxu0 0
    %212 = vmatpush2.bf16.msra.mxu0 0
    %213 = vmatprep.subr.bf16.mxu0 0
    %214 = vmatpush2.bf16.msra.mxu0 0
    %215 = vmatprep.subr.bf16.mxu0 0
    %216 = vmatpush2.bf16.msra.mxu0 0
    %217 = vmatprep.subr.bf16.mxu0 0
    %218 = vmatpush2.bf16.msra.mxu0 0
    %219 = vmatprep.subr.bf16.mxu0 0
    %220 = vmatpush2.bf16.msra.mxu0 0
    %221 = vmatprep.subr.bf16.mxu0 0
    %222 = vmatpush2.bf16.msra.mxu0 0
    %223 = vmatprep.mubr.bf16.mxu0 0
    %224 = vmatmul.mubr.bf16.gmra.mxu0 %v189
    %v225 = vpop.f32.mrf.mxu0
    %v226 = vadd.f32 %v171, %v225
    %v227 = vpop.f32.mrf.mxu0
    %v228 = vpop.f32.mrf.mxu0
    %v229 = vadd.f32 %v174, %v228
    %v230 = vpop.f32.mrf.mxu0
    %231 = vdwg.mxu0
    %v232 = vld [vmem:[%s4] sm:$0x1]
    %v234 = vlaneseq
    %v235 = vshrl.u32 %v234, 7
    %v236 = vsub.s32 0, %v235
    %v237 = vrot.slane %v232, %v236
    %v239 = vadd.f32 %v226, %v237
    %v240 = vadd.f32 %v229, %v237
    %v241 = vmax.f32 %v239, 0.0
    %v242 = vmax.f32 %v240, 0.0
    %v243 = vpack.c.bf16 %v242, %v241
    %v244 = vld [vmem:[%s5] sm:$0xf]
    %v245 = vld [vmem:[%s5 + $0x4] sm:$0xf]
    %v246 = vld [vmem:[%s5 + $0x8] sm:$0xf]
    %v247 = vld [vmem:[%s5 + $0xc] sm:$0xf]
    %v248 = vld [vmem:[%s5 + $0x10] sm:$0xf]
    %v249 = vld [vmem:[%s5 + $0x14] sm:$0xf]
    %v250 = vld [vmem:[%s5 + $0x18] sm:$0xf]
    %v251 = vld [vmem:[%s5 + $0x1c] sm:$0xf]
    %v252 = vld [vmem:[%s5 + $0x20] sm:$0xf]
    %v253 = vld [vmem:[%s5 + $0x24] sm:$0xf]
    %v254 = vld [vmem:[%s5 + $0x28] sm:$0xf]
    %v255 = vld [vmem:[%s5 + $0x2c] sm:$0xf]
    %v256 = vld [vmem:[%s5 + $0x30] sm:$0xf]
    %v257 = vld [vmem:[%s5 + $0x34] sm:$0xf]
    %v258 = vld [vmem:[%s5 + $0x38] sm:$0xf]
    %v259 = vld [vmem:[%s5 + $0x3c] sm:$0xf]
    %v260 = vld [vmem:[%s6] sm:$0x1]
    %v262 = vlaneseq
    %v263 = vshrl.u32 %v262, 7
    %v264 = vsub.s32 0, %v263
    %v265 = vrot.slane %v260, %v264
    %v283 = vunpack.c.l.b16 %v244
    %v284 = vunpack.c.l.b16 %v245
    %v285 = vunpack.c.l.b16 %v246
    %v286 = vunpack.c.l.b16 %v247
    %v287 = vunpack.c.l.b16 %v248
    %v288 = vunpack.c.l.b16 %v249
    %v289 = vunpack.c.l.b16 %v250
    %v290 = vunpack.c.l.b16 %v251
    %v291 = vunpack.c.l.b16 %v252
    %v292 = vunpack.c.l.b16 %v253
    %v293 = vunpack.c.l.b16 %v254
    %v294 = vunpack.c.l.b16 %v255
    %v295 = vunpack.c.l.b16 %v256
    %v296 = vunpack.c.l.b16 %v257
    %v297 = vunpack.c.l.b16 %v258
    %v298 = vunpack.c.l.b16 %v259
    %v299 = vpack.c.b16 %v284, %v283
    %v300 = vpack.c.b16 %v286, %v285
    %v301 = vpack.c.b16 %v288, %v287
    %v302 = vpack.c.b16 %v290, %v289
    %v303 = vpack.c.b16 %v292, %v291
    %v304 = vpack.c.b16 %v294, %v293
    %v305 = vpack.c.b16 %v296, %v295
    %v306 = vpack.c.b16 %v298, %v297
    %315 = vmatprep.subr.bf16.mxu0 0
    %316 = vmatpush1.bf16.msra.mxu0 %v306
    %317 = vmatprep.subr.bf16.mxu0 0
    %318 = vmatpush1.bf16.msra.mxu0 %v305
    %319 = vmatprep.subr.bf16.mxu0 0
    %320 = vmatpush1.bf16.msra.mxu0 %v304
    %321 = vmatprep.subr.bf16.mxu0 0
    %322 = vmatpush1.bf16.msra.mxu0 %v303
    %323 = vmatprep.subr.bf16.mxu0 0
    %324 = vmatpush1.bf16.msra.mxu0 %v302
    %325 = vmatprep.subr.bf16.mxu0 0
    %326 = vmatpush1.bf16.msra.mxu0 %v301
    %327 = vmatprep.subr.bf16.mxu0 0
    %328 = vmatpush1.bf16.msra.mxu0 %v300
    %329 = vmatprep.subr.bf16.mxu0 0
    %330 = vmatpush1.bf16.msra.mxu0 %v299
    %331 = vmatprep.subr.bf16.mxu0 0
    %332 = vmatpush2.bf16.msra.mxu0 0
    %333 = vmatprep.subr.bf16.mxu0 0
    %334 = vmatpush2.bf16.msra.mxu0 0
    %335 = vmatprep.subr.bf16.mxu0 0
    %336 = vmatpush2.bf16.msra.mxu0 0
    %337 = vmatprep.subr.bf16.mxu0 0
    %338 = vmatpush2.bf16.msra.mxu0 0
    %339 = vmatprep.subr.bf16.mxu0 0
    %340 = vmatpush2.bf16.msra.mxu0 0
    %341 = vmatprep.subr.bf16.mxu0 0
    %342 = vmatpush2.bf16.msra.mxu0 0
    %343 = vmatprep.subr.bf16.mxu0 0
    %344 = vmatpush2.bf16.msra.mxu0 0
    %345 = vmatprep.subr.bf16.mxu0 0
    %346 = vmatpush2.bf16.msra.mxu0 0
    %347 = vmatprep.mubr.bf16.mxu0 0
    %348 = vmatmul.mubr.bf16.gmra.mxu0 %v243
    %v349 = vpop.f32.mrf.mxu0
    %v350 = vadd.f32 %v265, %v349
    %v351 = vpop.f32.mrf.mxu0
    %v352 = vpop.f32.mrf.mxu0
    %v353 = vadd.f32 %v265, %v352
    %v354 = vpop.f32.mrf.mxu0
    %355 = vdwg.mxu0
    %v356 = vmax.f32 %v350, 0.0
    %v357 = vmax.f32 %v353, 0.0
    %v358 = vpack.c.bf16 %v357, %v356
    %v359 = vld [vmem:[#allocation7] sm:$0xf]
    %v360 = vld [vmem:[#allocation7 + $0x4] sm:$0xf]
    %v361 = vld [vmem:[#allocation7 + $0x8] sm:$0xf]
    %v362 = vld [vmem:[#allocation7 + $0xc] sm:$0xf]
    %v363 = vld [vmem:[#allocation7 + $0x10] sm:$0xf]
    %v364 = vld [vmem:[#allocation7 + $0x14] sm:$0xf]
    %v365 = vld [vmem:[#allocation7 + $0x18] sm:$0xf]
    %v366 = vld [vmem:[#allocation7 + $0x1c] sm:$0xf]
    %v367 = vld [vmem:[#allocation7 + $0x20] sm:$0xf]
    %v368 = vld [vmem:[#allocation7 + $0x24] sm:$0xf]
    %v369 = vld [vmem:[#allocation7 + $0x28] sm:$0xf]
    %v370 = vld [vmem:[#allocation7 + $0x2c] sm:$0xf]
    %v371 = vld [vmem:[#allocation7 + $0x30] sm:$0xf]
    %v372 = vld [vmem:[#allocation7 + $0x34] sm:$0xf]
    %v373 = vld [vmem:[#allocation7 + $0x38] sm:$0xf]
    %v374 = vld [vmem:[#allocation7 + $0x3c] sm:$0xf]
    %v375 = vld [vmem:[%s8] sm:$0x1]
    %v377 = vlaneseq
    %v378 = vshrl.u32 %v377, 7
    %v379 = vsub.s32 0, %v378
    %v380 = vrot.slane %v375, %v379
    %v398 = vunpack.c.l.b16 %v359
    %v399 = vunpack.c.l.b16 %v360
    %v400 = vunpack.c.l.b16 %v361
    %v401 = vunpack.c.l.b16 %v362
    %v402 = vunpack.c.l.b16 %v363
    %v403 = vunpack.c.l.b16 %v364
    %v404 = vunpack.c.l.b16 %v365
    %v405 = vunpack.c.l.b16 %v366
    %v406 = vunpack.c.l.b16 %v367
    %v407 = vunpack.c.l.b16 %v368
    %v408 = vunpack.c.l.b16 %v369
    %v409 = vunpack.c.l.b16 %v370
    %v410 = vunpack.c.l.b16 %v371
    %v411 = vunpack.c.l.b16 %v372
    %v412 = vunpack.c.l.b16 %v373
    %v413 = vunpack.c.l.b16 %v374
    %v414 = vpack.c.b16 %v399, %v398
    %v415 = vpack.c.b16 %v401, %v400
    %v416 = vpack.c.b16 %v403, %v402
    %v417 = vpack.c.b16 %v405, %v404
    %v418 = vpack.c.b16 %v407, %v406
    %v419 = vpack.c.b16 %v409, %v408
    %v420 = vpack.c.b16 %v411, %v410
    %v421 = vpack.c.b16 %v413, %v412
    %430 = vmatprep.subr.bf16.mxu0 0
    %431 = vmatpush1.bf16.msra.mxu0 %v421
    %432 = vmatprep.subr.bf16.mxu0 0
    %433 = vmatpush1.bf16.msra.mxu0 %v420
    %434 = vmatprep.subr.bf16.mxu0 0
    %435 = vmatpush1.bf16.msra.mxu0 %v419
    %436 = vmatprep.subr.bf16.mxu0 0
    %437 = vmatpush1.bf16.msra.mxu0 %v418
    %438 = vmatprep.subr.bf16.mxu0 0
    %439 = vmatpush1.bf16.msra.mxu0 %v417
    %440 = vmatprep.subr.bf16.mxu0 0
    %441 = vmatpush1.bf16.msra.mxu0 %v416
    %442 = vmatprep.subr.bf16.mxu0 0
    %443 = vmatpush1.bf16.msra.mxu0 %v415
    %444 = vmatprep.subr.bf16.mxu0 0
    %445 = vmatpush1.bf16.msra.mxu0 %v414
    %446 = vmatprep.subr.bf16.mxu0 0
    %447 = vmatpush2.bf16.msra.mxu0 0
    %448 = vmatprep.subr.bf16.mxu0 0
    %449 = vmatpush2.bf16.msra.mxu0 0
    %450 = vmatprep.subr.bf16.mxu0 0
    %451 = vmatpush2.bf16.msra.mxu0 0
    %452 = vmatprep.subr.bf16.mxu0 0
    %453 = vmatpush2.bf16.msra.mxu0 0
    %454 = vmatprep.subr.bf16.mxu0 0
    %455 = vmatpush2.bf16.msra.mxu0 0
    %456 = vmatprep.subr.bf16.mxu0 0
    %457 = vmatpush2.bf16.msra.mxu0 0
    %458 = vmatprep.subr.bf16.mxu0 0
    %459 = vmatpush2.bf16.msra.mxu0 0
    %460 = vmatprep.subr.bf16.mxu0 0
    %461 = vmatpush2.bf16.msra.mxu0 0
    %462 = vmatprep.mubr.bf16.mxu0 0
    %463 = vmatmul.mubr.bf16.gmra.mxu0 %v358
    %v464 = vpop.f32.mrf.mxu0
    %v465 = vadd.f32 %v380, %v464
    %v466 = vpop.f32.mrf.mxu0
    %v467 = vpop.f32.mrf.mxu0
    %v468 = vadd.f32 %v380, %v467
    %v469 = vpop.f32.mrf.mxu0
    %470 = vdwg.mxu0
    %v471 = vmax.f32 %v465, 0.0
    %v472 = vmax.f32 %v468, 0.0
    %v473 = vpack.c.bf16 %v472, %v471
    %v474 = vld [vmem:[#allocation9] sm:$0xf]
    %v475 = vld [vmem:[#allocation9 + $0x4] sm:$0xf]
    %v476 = vld [vmem:[#allocation9 + $0x8] sm:$0xf]
    %v477 = vld [vmem:[#allocation9 + $0xc] sm:$0xf]
    %v478 = vld [vmem:[#allocation9 + $0x10] sm:$0xf]
    %v479 = vld [vmem:[#allocation9 + $0x14] sm:$0xf]
    %v480 = vld [vmem:[#allocation9 + $0x18] sm:$0xf]
    %v481 = vld [vmem:[#allocation9 + $0x1c] sm:$0xf]
    %v482 = vld [vmem:[#allocation9 + $0x20] sm:$0xf]
    %v483 = vld [vmem:[#allocation9 + $0x24] sm:$0xf]
    %v484 = vld [vmem:[#allocation9 + $0x28] sm:$0xf]
    %v485 = vld [vmem:[#allocation9 + $0x2c] sm:$0xf]
    %v486 = vld [vmem:[#allocation9 + $0x30] sm:$0xf]
    %v487 = vld [vmem:[#allocation9 + $0x34] sm:$0xf]
    %v488 = vld [vmem:[#allocation9 + $0x38] sm:$0xf]
    %v489 = vld [vmem:[#allocation9 + $0x3c] sm:$0xf]
    %v490 = vld [vmem:[%s10] sm:$0x1]
    %v492 = vlaneseq
    %v493 = vshrl.u32 %v492, 7
    %v494 = vsub.s32 0, %v493
    %v495 = vrot.slane %v490, %v494
    %v513 = vunpack.c.l.b16 %v474
    %v514 = vunpack.c.l.b16 %v475
    %v515 = vunpack.c.l.b16 %v476
    %v516 = vunpack.c.l.b16 %v477
    %v517 = vunpack.c.l.b16 %v478
    %v518 = vunpack.c.l.b16 %v479
    %v519 = vunpack.c.l.b16 %v480
    %v520 = vunpack.c.l.b16 %v481
    %v521 = vunpack.c.l.b16 %v482
    %v522 = vunpack.c.l.b16 %v483
    %v523 = vunpack.c.l.b16 %v484
    %v524 = vunpack.c.l.b16 %v485
    %v525 = vunpack.c.l.b16 %v486
    %v526 = vunpack.c.l.b16 %v487
    %v527 = vunpack.c.l.b16 %v488
    %v528 = vunpack.c.l.b16 %v489
    %v529 = vpack.c.b16 %v514, %v513
    %v530 = vpack.c.b16 %v516, %v515
    %v531 = vpack.c.b16 %v518, %v517
    %v532 = vpack.c.b16 %v520, %v519
    %v533 = vpack.c.b16 %v522, %v521
    %v534 = vpack.c.b16 %v524, %v523
    %v535 = vpack.c.b16 %v526, %v525
    %v536 = vpack.c.b16 %v528, %v527
    %545 = vmatprep.subr.bf16.mxu0 0
    %546 = vmatpush1.bf16.msra.mxu0 %v536
    %547 = vmatprep.subr.bf16.mxu0 0
    %548 = vmatpush1.bf16.msra.mxu0 %v535
    %549 = vmatprep.subr.bf16.mxu0 0
    %550 = vmatpush1.bf16.msra.mxu0 %v534
    %551 = vmatprep.subr.bf16.mxu0 0
    %552 = vmatpush1.bf16.msra.mxu0 %v533
    %553 = vmatprep.subr.bf16.mxu0 0
    %554 = vmatpush1.bf16.msra.mxu0 %v532
    %555 = vmatprep.subr.bf16.mxu0 0
    %556 = vmatpush1.bf16.msra.mxu0 %v531
    %557 = vmatprep.subr.bf16.mxu0 0
    %558 = vmatpush1.bf16.msra.mxu0 %v530
    %559 = vmatprep.subr.bf16.mxu0 0
    %560 = vmatpush1.bf16.msra.mxu0 %v529
    %561 = vmatprep.subr.bf16.mxu0 0
    %562 = vmatpush2.bf16.msra.mxu0 0
    %563 = vmatprep.subr.bf16.mxu0 0
    %564 = vmatpush2.bf16.msra.mxu0 0
    %565 = vmatprep.subr.bf16.mxu0 0
    %566 = vmatpush2.bf16.msra.mxu0 0
    %567 = vmatprep.subr.bf16.mxu0 0
    %568 = vmatpush2.bf16.msra.mxu0 0
    %569 = vmatprep.subr.bf16.mxu0 0
    %570 = vmatpush2.bf16.msra.mxu0 0
    %571 = vmatprep.subr.bf16.mxu0 0
    %572 = vmatpush2.bf16.msra.mxu0 0
    %573 = vmatprep.subr.bf16.mxu0 0
    %574 = vmatpush2.bf16.msra.mxu0 0
    %575 = vmatprep.subr.bf16.mxu0 0
    %576 = vmatpush2.bf16.msra.mxu0 0
    %577 = vmatprep.mubr.bf16.mxu0 0
    %578 = vmatmul.mubr.bf16.gmra.mxu0 %v473
    %v579 = vpop.f32.mrf.mxu0
    %v580 = vadd.f32 %v495, %v579
    %v581 = vpop.f32.mrf.mxu0
    %v582 = vpop.f32.mrf.mxu0
    %v583 = vadd.f32 %v495, %v582
    %v584 = vpop.f32.mrf.mxu0
    %585 = vdwg.mxu0
    %v586 = vmax.f32 %v580, 0.0
    %v587 = vmax.f32 %v583, 0.0
    %v588 = vpack.c.bf16 %v587, %v586
    %v589 = vld [vmem:[%s11] sm:$0xf]
    %v590 = vld [vmem:[%s11 + $0x4] sm:$0xf]
    %v591 = vld [vmem:[%s11 + $0x8] sm:$0xf]
    %v592 = vld [vmem:[%s11 + $0xc] sm:$0xf]
    %v593 = vld [vmem:[%s11 + $0x10] sm:$0xf]
    %v594 = vld [vmem:[%s11 + $0x14] sm:$0xf]
    %v595 = vld [vmem:[%s11 + $0x18] sm:$0xf]
    %v596 = vld [vmem:[%s11 + $0x1c] sm:$0xf]
    %v597 = vld [vmem:[%s11 + $0x20] sm:$0xf]
    %v598 = vld [vmem:[%s11 + $0x24] sm:$0xf]
    %v599 = vld [vmem:[%s11 + $0x28] sm:$0xf]
    %v600 = vld [vmem:[%s11 + $0x2c] sm:$0xf]
    %v601 = vld [vmem:[%s11 + $0x30] sm:$0xf]
    %v602 = vld [vmem:[%s11 + $0x34] sm:$0xf]
    %v603 = vld [vmem:[%s11 + $0x38] sm:$0xf]
    %v604 = vld [vmem:[%s11 + $0x3c] sm:$0xf]
    %v605 = vld [vmem:[%s12] sm:$0x1]
    %v607 = vlaneseq
    %v608 = vshrl.u32 %v607, 7
    %v609 = vsub.s32 0, %v608
    %v610 = vrot.slane %v605, %v609
    %v628 = vunpack.c.l.b16 %v589
    %v629 = vunpack.c.l.b16 %v590
    %v630 = vunpack.c.l.b16 %v591
    %v631 = vunpack.c.l.b16 %v592
    %v632 = vunpack.c.l.b16 %v593
    %v633 = vunpack.c.l.b16 %v594
    %v634 = vunpack.c.l.b16 %v595
    %v635 = vunpack.c.l.b16 %v596
    %v636 = vunpack.c.l.b16 %v597
    %v637 = vunpack.c.l.b16 %v598
    %v638 = vunpack.c.l.b16 %v599
    %v639 = vunpack.c.l.b16 %v600
    %v640 = vunpack.c.l.b16 %v601
    %v641 = vunpack.c.l.b16 %v602
    %v642 = vunpack.c.l.b16 %v603
    %v643 = vunpack.c.l.b16 %v604
    %v644 = vpack.c.b16 %v629, %v628
    %v645 = vpack.c.b16 %v631, %v630
    %v646 = vpack.c.b16 %v633, %v632
    %v647 = vpack.c.b16 %v635, %v634
    %v648 = vpack.c.b16 %v637, %v636
    %v649 = vpack.c.b16 %v639, %v638
    %v650 = vpack.c.b16 %v641, %v640
    %v651 = vpack.c.b16 %v643, %v642
    %660 = vmatprep.subr.bf16.mxu0 0
    %661 = vmatpush1.bf16.msra.mxu0 %v651
    %662 = vmatprep.subr.bf16.mxu0 0
    %663 = vmatpush1.bf16.msra.mxu0 %v650
    %664 = vmatprep.subr.bf16.mxu0 0
    %665 = vmatpush1.bf16.msra.mxu0 %v649
    %666 = vmatprep.subr.bf16.mxu0 0
    %667 = vmatpush1.bf16.msra.mxu0 %v648
    %668 = vmatprep.subr.bf16.mxu0 0
    %669 = vmatpush1.bf16.msra.mxu0 %v647
    %670 = vmatprep.subr.bf16.mxu0 0
    %671 = vmatpush1.bf16.msra.mxu0 %v646
    %672 = vmatprep.subr.bf16.mxu0 0
    %673 = vmatpush1.bf16.msra.mxu0 %v645
    %674 = vmatprep.subr.bf16.mxu0 0
    %675 = vmatpush1.bf16.msra.mxu0 %v644
    %676 = vmatprep.subr.bf16.mxu0 0
    %677 = vmatpush2.bf16.msra.mxu0 0
    %678 = vmatprep.subr.bf16.mxu0 0
    %679 = vmatpush2.bf16.msra.mxu0 0
    %680 = vmatprep.subr.bf16.mxu0 0
    %681 = vmatpush2.bf16.msra.mxu0 0
    %682 = vmatprep.subr.bf16.mxu0 0
    %683 = vmatpush2.bf16.msra.mxu0 0
    %684 = vmatprep.subr.bf16.mxu0 0
    %685 = vmatpush2.bf16.msra.mxu0 0
    %686 = vmatprep.subr.bf16.mxu0 0
    %687 = vmatpush2.bf16.msra.mxu0 0
    %688 = vmatprep.subr.bf16.mxu0 0
    %689 = vmatpush2.bf16.msra.mxu0 0
    %690 = vmatprep.subr.bf16.mxu0 0
    %691 = vmatpush2.bf16.msra.mxu0 0
    %692 = vmatprep.mubr.bf16.mxu0 0
    %693 = vmatmul.mubr.bf16.gmra.mxu0 %v588
    %v694 = vpop.f32.mrf.mxu0
    %v695 = vadd.f32 %v610, %v694
    %v696 = vpop.f32.mrf.mxu0
    %v697 = vpop.f32.mrf.mxu0
    %v698 = vadd.f32 %v610, %v697
    %v699 = vpop.f32.mrf.mxu0
    %700 = vdwg.mxu0
    %vm701 = vcmask 64512
    %702 = vst.msk [vmem:[%s13] sm:$0xff] %vm701, %v695
    %vm703 = vcmask 58368
    %704 = vst.msk [vmem:[%s13 + $0x8] sm:$0x3] %vm703, %v698
    // Predicated region
    $region74: #{tpu_custom_call.1} parent=1 // pred_check
      _
    $region75: #{tpu_custom_call.1} parent=1 // pred_check_branch
      %706 = sbr.rel (0) target = $region77
    $region76: #{tpu_custom_call.1} parent=1 // pred_region
      _
    $region77: #{tpu_custom_call.1} parent=1 // pred_fallthru
      _
    // Predicated region
    $region78: #{tpu_custom_call.1} parent=1 // pred_check
      _
    $region79: #{tpu_custom_call.1} parent=1 // pred_check_branch
      %708 = sbr.rel (0) target = $region81
    $region80: #{tpu_custom_call.1} parent=1 // pred_region
      _
    $region81: #{tpu_custom_call.1} parent=1 // pred_fallthru
      _
    %709 = vsyncpa [#allocation3], 1
    %710 = vsyncpa [#allocation5], 1
    %711 = vsyncpa [#allocation8], 1

</llo_original>
